<compile_context>
chip_gen: v7x
topology: tpu7x:2x2x1
jax: 0.10.0
libtpu: 0.0.40
codegen_flags: <defaults>
</compile_context>

<pallas_src>
import functools

import jax
import jax.numpy as jnp
from jax.experimental import pallas as pl
from jax.experimental.pallas import tpu as pltpu


def _dcmm_fused_kernel(x_ref, vis_ref, w_head_ref, b_head_ref, out_ref,
                       base_sc, g_sc, *, block_n, n_rows):
    p = pl.program_id(0)          # 0 = reduction pass, 1 = broadcast pass
    i = pl.program_id(1)          # row-tile index

    # Cosine-normalized visual features (f32 compute regardless of input dtype).
    vis = vis_ref[...].astype(jnp.float32)                          # [tile, V]
    inv_norm = jax.lax.rsqrt(jnp.sum(vis * vis, axis=-1, keepdims=True) + 1e-12)
    vn = vis * inv_norm

    # Mask rows past the true N in the (possibly ragged) last tile.  Both vn
    # rows and m lanes are zeroed so garbage (possibly NaN) VMEM never reaches
    # the g accumulator.
    row_ids = i * block_n + jax.lax.broadcasted_iota(jnp.int32, (block_n, 1), 0)
    lane_ids = i * block_n + jax.lax.broadcasted_iota(jnp.int32, (1, block_n), 1)
    vn = jnp.where(row_ids < n_rows, vn, 0.0)

    @pl.when(p == 0)
    def _reduce_pass():
        @pl.when(i == 0)
        def _():
            g_sc[...] = jnp.zeros_like(g_sc)

        # Fused head: [base; m]^T = W_head^T . x^T + b_head^T        [2, tile]
        x = x_ref[...].astype(jnp.float32)
        p_t = jax.lax.dot_general(
            w_head_ref[...], x, (((1,), (1,)), ((), ())),
            preferred_element_type=jnp.float32) + b_head_ref[...]
        base_row = p_t[0:1, :]                                       # [1, tile]
        m_row = jnp.where(lane_ids < n_rows, p_t[1:2, :], 0.0)       # [1, tile]

        # Partial reduction g += m . vn                              [1, V]
        g_sc[...] += jax.lax.dot_general(
            m_row, vn, (((1,), (0,)), ((), ())),
            preferred_element_type=jnp.float32)
        base_sc[i] = base_row                                        # VMEM stash

    @pl.when(p == 1)
    def _broadcast_pass():
        # Conv contribution per row, lane dense: g . vn^T            [1, tile]
        conv_row = jax.lax.dot_general(
            g_sc[...], vn, (((1,), (1,)), ((), ())),
            preferred_element_type=jnp.float32)
        out_ref[...] = base_sc[i] + conv_row


def _round_up(a, b):
    return ((a + b - 1) // b) * b


def _choose_block_n(n, c0, v, x_isz, v_isz):
    # Size the row tile by VMEM bytes: ~16 MiB for the double-buffered input
    # stream (x + vis) amortizes the ~0.35 us per-grid-step overhead while
    # staying comfortably inside v7x's 64 MiB VMEM.
    budget = 16 * 1024 * 1024
    per_row = 2 * (c0 * x_isz + v * v_isz)
    bn = budget // max(per_row, 1)
    bn = max(128, min(int(bn), 8192))
    bn = (bn // 128) * 128                 # keep output stores lane-dense
    bn = min(bn, _round_up(n, 128))        # never exceed one padded tile
    return int(bn)


@functools.partial(jax.jit, static_argnames=("block_n",))
def dcmm_forward(x, vis, params, block_n=None):
    """x: [N, C0] node features, vis: [N, V] visual features. Returns [N] scores."""
    N, C0 = x.shape
    V = vis.shape[1]
    x_isz, v_isz = x.dtype.itemsize, vis.dtype.itemsize

    if block_n is None:
        block_n = _choose_block_n(N, C0, V, x_isz, v_isz)
    assert block_n % 128 == 0
    n_tiles = int(pl.cdiv(N, block_n))

    # ---- wrapper-side weight folding (identity conv activation, dropout=0) ----
    w_fold = params["w_conv"] @ params["w_proj"]                          # [C1, 1]
    b_fold = params["b_conv"] @ params["w_proj"]                          # [1, 1]
    w_cat = jnp.concatenate([params["w_nodes"], w_fold], axis=1)          # [C1, 2]
    b_cat = jnp.concatenate([params["b_nodes"] + params["b_proj"], b_fold],
                            axis=1)                                       # [1, 2]
    w_head_t = (params["w_mlp"] @ w_cat).T.astype(jnp.float32)            # [2, C0]
    b_head_t = (params["b_mlp"] @ w_cat + b_cat).T.astype(jnp.float32)    # [2, 1]

    # VMEM footprint: double-buffered x/vis/out tiles + scratch (+ headroom),
    # capped at 48 MiB so it is also safe on v7x (64 MiB physical VMEM).
    need = (2 * block_n * (C0 * x_isz + V * v_isz)
            + 2 * block_n * 4
            + 8 * n_tiles * block_n * 4
            + 8 * _round_up(V, 128) * 4)
    vmem_limit = int(min(max(need + (8 << 20), 32 << 20), 48 << 20))

    kernel = functools.partial(_dcmm_fused_kernel, block_n=block_n, n_rows=N)

    scores = pl.pallas_call(
        kernel,
        out_shape=jax.ShapeDtypeStruct((1, N), jnp.float32),
        grid=(2, n_tiles),
        in_specs=[
            # x only needed in pass 0; pin block 0 during pass 1 (no re-DMA).
            pl.BlockSpec((block_n, C0), lambda p, i: (i * (1 - p), 0)),
            pl.BlockSpec((block_n, V), lambda p, i: (i, 0)),
            pl.BlockSpec((2, C0), lambda p, i: (0, 0)),
            pl.BlockSpec((2, 1), lambda p, i: (0, 0)),
        ],
        # Output only materializes in pass 1; during pass 0 the block index is
        # pinned to 0 so no garbage write-backs happen.
        out_specs=pl.BlockSpec((1, block_n), lambda p, i: (0, i * p)),
        scratch_shapes=[
            pltpu.VMEM((n_tiles, 1, block_n), jnp.float32),   # base scores
            pltpu.VMEM((1, V), jnp.float32),                  # g = vn^T . m
        ],
        compiler_params=pltpu.CompilerParams(
            dimension_semantics=("arbitrary", "arbitrary"),
            vmem_limit_bytes=vmem_limit),
        cost_estimate=pl.CostEstimate(
            flops=int(N * (4 * C0 + 10 * V)),
            transcendentals=int(2 * N),
            bytes_accessed=int(N * (C0 * x_isz + 2 * V * v_isz + 4)
                               + 4 * (2 * C0 + 2))),
    )(x, vis, w_head_t, b_head_t)

    return scores[0]


def init_params(key, c0, c1, cc):
    """Deterministic synthetic parameters. Weights stored as [in, out] (transposed
    relative to torch.nn.Linear's [out, in], so the math is x @ W + b)."""
    ks = jax.random.split(key, 8)
    scale = 0.1
    return {
        "w_mlp":   scale * jax.random.normal(ks[0], (c0, c1), jnp.float32),
        "b_mlp":   scale * jax.random.normal(ks[1], (1, c1), jnp.float32),
        "w_nodes": scale * jax.random.normal(ks[2], (c1, 1), jnp.float32),
        "b_nodes": scale * jax.random.normal(ks[3], (1, 1), jnp.float32),
        "w_conv":  scale * jax.random.normal(ks[4], (c1, cc), jnp.float32),
        "b_conv":  scale * jax.random.normal(ks[5], (1, cc), jnp.float32),
        "w_proj":  scale * jax.random.normal(ks[6], (cc, 1), jnp.float32),
        "b_proj":  scale * jax.random.normal(ks[7], (1, 1), jnp.float32),
    }


def dcmm_reference(x, vis, params):
    """Pure-JAX reference in the original (unfolded, O(N^2)) formulation."""
    h = x @ params["w_mlp"] + params["b_mlp"]
    nodes_scores = h @ params["w_nodes"] + params["b_nodes"]
    inv_norm = jax.lax.rsqrt(jnp.sum(vis * vis, axis=-1, keepdims=True) + 1e-12)
    vn = vis * inv_norm
    sim = vn @ vn.T
    msg = h @ params["w_conv"] + params["b_conv"]
    out_conv = sim @ msg
    conv_scores = out_conv @ params["w_proj"] + params["b_proj"]
    return (nodes_scores + conv_scores)[:, 0]


if __name__ == "__main__":
    # Small shapes consistent with the module:
    # input_channels=[4, 8], conv_channels=4, visual_dim=32, N=256 graph nodes.
    N, C0, C1, CC, V = 256, 4, 8, 4, 32

    key = jax.random.PRNGKey(0)
    kx, kv, kp = jax.random.split(key, 3)
    x = jax.random.normal(kx, (N, C0), jnp.float32)
    vis = jax.random.normal(kv, (N, V), jnp.float32)
    params = init_params(kp, C0, C1, CC)

    # Auto tile size -> a single 256-row tile, grid (2, 1).
    scores = dcmm_forward(x, vis, params)
    jax.block_until_ready(scores)
    assert scores.shape == (N,)
    ref = dcmm_reference(x, vis, params)
    err = float(jnp.max(jnp.abs(scores - ref)))
    assert jnp.allclose(scores, ref, rtol=1e-2, atol=1e-2), err

    # Ragged multi-tile path (N not a multiple of block_n) -> in-kernel masking,
    # no wrapper padding.
    N2 = 200
    x2, vis2 = x[:N2], vis[:N2]
    scores2 = dcmm_forward(x2, vis2, params, block_n=128)
    jax.block_until_ready(scores2)
    ref2 = dcmm_reference(x2, vis2, params)
    err2 = float(jnp.max(jnp.abs(scores2 - ref2)))
    assert scores2.shape == (N2,)
    assert jnp.allclose(scores2, ref2, rtol=1e-2, atol=1e-2), err2

    print("KERNEL_OK")
</pallas_src>

<mosaic_0001>
module attributes {stable_mosaic.version = 11 : i64} {
  func.func @_dcmm_fused_kernel(%arg0: i32, %arg1: i32, %arg2: memref<256x4xf32, #tpu.memory_space<vmem>>, %arg3: memref<256x32xf32, #tpu.memory_space<vmem>>, %arg4: memref<2x4xf32, #tpu.memory_space<vmem>>, %arg5: memref<2x1xf32, #tpu.memory_space<vmem>>, %arg6: memref<1x256xf32, #tpu.memory_space<vmem>>, %arg7: memref<1x1x256xf32, #tpu.memory_space<vmem>>, %arg8: memref<1x32xf32, #tpu.memory_space<vmem>>) attributes {dimension_semantics = [#tpu.dimension_semantics<arbitrary>, #tpu.dimension_semantics<arbitrary>], iteration_bounds = array<i64: 2, 1>, scalar_prefetch = 0 : i64, scratch_operands = 2 : i64, tpu.core_type = #tpu.core_type<tc>, window_params = [{transform_indices = @transform_0, window_bounds = array<i64: 256, 4>}, {transform_indices = @transform_1, window_bounds = array<i64: 256, 32>}, {pipeline_mode = #tpu.pipeline_mode<synchronous>, transform_indices = @transform_2, window_bounds = array<i64: 2, 4>}, {pipeline_mode = #tpu.pipeline_mode<synchronous>, transform_indices = @transform_3, window_bounds = array<i64: 2, 1>}, {transform_indices = @transform_4, window_bounds = array<i64: 1, 256>}]} {
    %c0 = arith.constant 0 : index
    %c0_0 = arith.constant 0 : index
    %0 = vector.load %arg3[%c0, %c0_0] : memref<256x32xf32, #tpu.memory_space<vmem>>, vector<256x32xf32>
    %1 = arith.mulf %0, %0 : vector<256x32xf32>
    %cst = arith.constant dense<0.000000e+00> : vector<256xf32>
    %2 = vector.multi_reduction <add>, %1, %cst [1] : vector<256x32xf32> to vector<256xf32>
    %3 = vector.shape_cast %2 : vector<256xf32> to vector<256x1xf32>
    %cst_1 = arith.constant 9.99999996E-13 : f32
    %4 = vector.broadcast %cst_1 : f32 to vector<256x1xf32>
    %5 = arith.addf %3, %4 : vector<256x1xf32>
    %6 = math.rsqrt %5 : vector<256x1xf32>
    %7 = vector.broadcast %6 : vector<256x1xf32> to vector<256x32xf32>
    %8 = arith.mulf %0, %7 : vector<256x32xf32>
    %c256_i32 = arith.constant 256 : i32
    %9 = arith.muli %arg1, %c256_i32 : i32
    %10 = tpu.iota {dimensions = array<i32: 0>} : vector<256x1xi32>
    %11 = vector.broadcast %9 : i32 to vector<256x1xi32>
    %12 = arith.addi %11, %10 : vector<256x1xi32>
    %c256_i32_2 = arith.constant 256 : i32
    %13 = arith.muli %arg1, %c256_i32_2 : i32
    %14 = tpu.iota {dimensions = array<i32: 1>} : vector<1x256xi32>
    %15 = vector.broadcast %13 : i32 to vector<1x256xi32>
    %16 = arith.addi %15, %14 : vector<1x256xi32>
    %c256_i32_3 = arith.constant 256 : i32
    %17 = vector.broadcast %c256_i32_3 : i32 to vector<256x1xi32>
    %18 = arith.cmpi slt, %12, %17 : vector<256x1xi32>
    %cst_4 = arith.constant 0.000000e+00 : f32
    %19 = vector.shape_cast %18 : vector<256x1xi1> to vector<256x1xi1>
    %20 = vector.broadcast %19 : vector<256x1xi1> to vector<256x32xi1>
    %21 = vector.broadcast %cst_4 : f32 to vector<256x32xf32>
    %22 = arith.select %20, %8, %21 : vector<256x32xi1>, vector<256x32xf32>
    %c0_i32 = arith.constant 0 : i32
    %23 = arith.cmpi eq, %arg0, %c0_i32 : i32
    %24 = arith.extui %23 : i1 to i32
    %c0_i32_5 = arith.constant 0 : i32
    %25 = arith.cmpi ne, %24, %c0_i32_5 : i32
    scf.if %25 {
      %c0_i32_7 = arith.constant 0 : i32
      %29 = arith.cmpi eq, %arg1, %c0_i32_7 : i32
      %30 = arith.extui %29 : i1 to i32
      %c0_i32_8 = arith.constant 0 : i32
      %31 = arith.cmpi ne, %30, %c0_i32_8 : i32
      scf.if %31 {
        %cst_25 = arith.constant 0.000000e+00 : f32
        %52 = vector.broadcast %cst_25 : f32 to vector<1x32xf32>
        %c0_26 = arith.constant 0 : index
        %c0_27 = arith.constant 0 : index
        %53 = vector.load %arg8[%c0_26, %c0_27] : memref<1x32xf32, #tpu.memory_space<vmem>>, vector<1x32xf32>
        tpu.vector_store %arg8[%c0_26, %c0_27], %52 {strides = array<i32>} : memref<1x32xf32, #tpu.memory_space<vmem>>, vector<1x32xf32>,
      } else {
      }
      %c0_9 = arith.constant 0 : index
      %c0_10 = arith.constant 0 : index
      %32 = vector.load %arg2[%c0_9, %c0_10] : memref<256x4xf32, #tpu.memory_space<vmem>>, vector<256x4xf32>
      %c0_11 = arith.constant 0 : index
      %c0_12 = arith.constant 0 : index
      %33 = vector.load %arg4[%c0_11, %c0_12] : memref<2x4xf32, #tpu.memory_space<vmem>>, vector<2x4xf32>
      %cst_13 = arith.constant dense<0.000000e+00> : vector<2x256xf32>
      %34 = tpu.matmul %33, %32, %cst_13 {dimension_numbers = #tpu.dot_dimension_numbers<[1], [1], [0], [0], [0, 0, 1, 0], [], []>} : vector<2x4xf32>, vector<256x4xf32>, vector<2x256xf32> -> vector<2x256xf32>
      %c0_14 = arith.constant 0 : index
      %c0_15 = arith.constant 0 : index
      %35 = vector.load %arg5[%c0_14, %c0_15] : memref<2x1xf32, #tpu.memory_space<vmem>>, vector<2x1xf32>
      %36 = vector.broadcast %35 : vector<2x1xf32> to vector<2x256xf32>
      %37 = arith.addf %34, %36 : vector<2x256xf32>
      %38 = vector.extract_strided_slice %37 {offsets = [0, 0], sizes = [1, 256], strides = [1, 1]} : vector<2x256xf32> to vector<1x256xf32>
      %c256_i32_16 = arith.constant 256 : i32
      %39 = vector.broadcast %c256_i32_16 : i32 to vector<1x256xi32>
      %40 = arith.cmpi slt, %16, %39 : vector<1x256xi32>
      %41 = vector.extract_strided_slice %37 {offsets = [1, 0], sizes = [1, 256], strides = [1, 1]} : vector<2x256xf32> to vector<1x256xf32>
      %cst_17 = arith.constant 0.000000e+00 : f32
      %42 = vector.broadcast %cst_17 : f32 to vector<1x256xf32>
      %43 = arith.select %40, %41, %42 : vector<1x256xi1>, vector<1x256xf32>
      %c0_18 = arith.constant 0 : index
      %c0_19 = arith.constant 0 : index
      %44 = vector.load %arg8[%c0_18, %c0_19] : memref<1x32xf32, #tpu.memory_space<vmem>>, vector<1x32xf32>
      %cst_20 = arith.constant dense<0.000000e+00> : vector<1x32xf32>
      %45 = tpu.matmul %43, %22, %cst_20 {dimension_numbers = #tpu.dot_dimension_numbers<[1], [0], [0], [1], [0, 0, 1, 1], [], []>} : vector<1x256xf32>, vector<256x32xf32>, vector<1x32xf32> -> vector<1x32xf32>
      %46 = arith.addf %44, %45 : vector<1x32xf32>
      %c0_21 = arith.constant 0 : index
      %c0_22 = arith.constant 0 : index
      %47 = vector.load %arg8[%c0_21, %c0_22] : memref<1x32xf32, #tpu.memory_space<vmem>>, vector<1x32xf32>
      tpu.vector_store %arg8[%c0_21, %c0_22], %46 {strides = array<i32>} : memref<1x32xf32, #tpu.memory_space<vmem>>, vector<1x32xf32>,
      %48 = arith.index_cast %arg1 : i32 to index
      %c0_23 = arith.constant 0 : index
      %c0_24 = arith.constant 0 : index
      %49 = vector.load %arg7[%48, %c0_23, %c0_24] : memref<1x1x256xf32, #tpu.memory_space<vmem>>, vector<1x1x256xf32>
      %50 = vector.shape_cast %49 : vector<1x1x256xf32> to vector<1x256xf32>
      %51 = vector.shape_cast %38 : vector<1x256xf32> to vector<1x1x256xf32>
      tpu.vector_store %arg7[%48, %c0_23, %c0_24], %51 {strides = array<i32>} : memref<1x1x256xf32, #tpu.memory_space<vmem>>, vector<1x1x256xf32>,
    } else {
    }
    %c1_i32 = arith.constant 1 : i32
    %26 = arith.cmpi eq, %arg0, %c1_i32 : i32
    %27 = arith.extui %26 : i1 to i32
    %c0_i32_6 = arith.constant 0 : i32
    %28 = arith.cmpi ne, %27, %c0_i32_6 : i32
    scf.if %28 {
      %c0_7 = arith.constant 0 : index
      %c0_8 = arith.constant 0 : index
      %29 = vector.load %arg8[%c0_7, %c0_8] : memref<1x32xf32, #tpu.memory_space<vmem>>, vector<1x32xf32>
      %cst_9 = arith.constant dense<0.000000e+00> : vector<1x256xf32>
      %30 = tpu.matmul %29, %22, %cst_9 {dimension_numbers = #tpu.dot_dimension_numbers<[1], [1], [0], [0], [0, 0, 1, 0], [], []>} : vector<1x32xf32>, vector<256x32xf32>, vector<1x256xf32> -> vector<1x256xf32>
      %31 = arith.index_cast %arg1 : i32 to index
      %c0_10 = arith.constant 0 : index
      %c0_11 = arith.constant 0 : index
      %32 = vector.load %arg7[%31, %c0_10, %c0_11] : memref<1x1x256xf32, #tpu.memory_space<vmem>>, vector<1x1x256xf32>
      %33 = vector.shape_cast %32 : vector<1x1x256xf32> to vector<1x256xf32>
      %34 = arith.addf %33, %30 : vector<1x256xf32>
      %c0_12 = arith.constant 0 : index
      %c0_13 = arith.constant 0 : index
      %35 = vector.load %arg6[%c0_12, %c0_13] : memref<1x256xf32, #tpu.memory_space<vmem>>, vector<1x256xf32>
      tpu.vector_store %arg6[%c0_12, %c0_13], %34 {strides = array<i32>} : memref<1x256xf32, #tpu.memory_space<vmem>>, vector<1x256xf32>,
    } else {
    }
    return
  }
  func.func @transform_0(%arg0: i32, %arg1: i32) -> (i32, i32) {
    %c1_i32 = arith.constant 1 : i32
    %0 = arith.subi %c1_i32, %arg0 : i32
    %1 = arith.muli %arg1, %0 : i32
    %c0_i32 = arith.constant 0 : i32
    %c0_i32_0 = arith.constant 0 : i32
    return %1, %c0_i32 : i32, i32
  }
  func.func @transform_1(%arg0: i32, %arg1: i32) -> (i32, i32) {
    %c0_i32 = arith.constant 0 : i32
    %c0_i32_0 = arith.constant 0 : i32
    return %arg1, %c0_i32 : i32, i32
  }
  func.func @transform_2(%arg0: i32, %arg1: i32) -> (i32, i32) {
    %c0_i32 = arith.constant 0 : i32
    %c0_i32_0 = arith.constant 0 : i32
    %c0_i32_1 = arith.constant 0 : i32
    return %c0_i32, %c0_i32_0 : i32, i32
  }
  func.func @transform_3(%arg0: i32, %arg1: i32) -> (i32, i32) {
    %c0_i32 = arith.constant 0 : i32
    %c0_i32_0 = arith.constant 0 : i32
    %c0_i32_1 = arith.constant 0 : i32
    return %c0_i32, %c0_i32_0 : i32, i32
  }
  func.func @transform_4(%arg0: i32, %arg1: i32) -> (i32, i32) {
    %0 = arith.muli %arg1, %arg0 : i32
    %c0_i32 = arith.constant 0 : i32
    %c0_i32_0 = arith.constant 0 : i32
    return %c0_i32, %0 : i32, i32
  }
}

</mosaic_0001>

<llo_original>
// kernel: dcmm_forward.1
$region0: #{dcmm_forward.1}
  #allocation0 [shape = 'u32[]', space=smem, size = 0x4, offset = 0x4, fixed_abs, tag = 'smem constant byte address 0x4 - core index']
  #allocation1 [shape = 'u32[144,128]{1,0:T(1,128)}', space=vmem, size = 0x12000, scoped, tag = 'internal scratch']
  #allocation2 [shape = 'f32[1,1,256]{2,1,0:T(1,128)}', space=vmem, size = 0x400, scoped, tag = 'scratch operand']
  #allocation3 [shape = 'f32[1,32]{1,0:T(1,128)}', space=vmem, size = 0x200, scoped, tag = 'scratch operand']
  %s0 = inlined_call_operand.vmem [shape: f32[256,4], index: 0, kind: input, shape index: {}]
  %s1 = inlined_call_operand.vmem [shape: f32[256,32], index: 1, kind: input, shape index: {}]
  %s2 = inlined_call_operand.vmem [shape: f32[2,4], index: 2, kind: input, shape index: {}]
  %s3 = inlined_call_operand.vmem [shape: f32[2,1], index: 3, kind: input, shape index: {}]
  %s4 = inlined_call_operand.hbm [shape: f32[1,256], index: 4, kind: output, shape index: {}]
  %s5 = sld [smem:[#allocation0]]
  $region61: #{dcmm_forward.1} parent=0
    _
  %s7 = ssub.s32 1, %s5
  %s8 = scalar_select 0, %s7, %s5
  $region1: #{dcmm_forward.1} parent=0
    #allocation4 [shape = 'u8[2048]{0}', space=vmem, size = 0x800, scoped, tag = 'output window, operand 0']
    #allocation5 [shape = 's32[2]{0}', space=sflag, size = 0x8, scoped, tag = 'scoped memory for dcmm_forward.1']
    %9 = vsyncpa [#allocation5], 0
    %s10 = scalar_lea.sflag [#allocation5], 1
    %11 = vsyncpa %s10, 0
    loop: start=0, step=1, limit=4
    $region2: #{dcmm_forward.1} parent=1 // loop_pre_header
      _
    $region3: #{dcmm_forward.1} parent=1 // loop_header
      %s13 = sphi 0, %s17
      %p14 = scmp.ge.s32.totalorder %s13, 4
      %s20 = sphi 0, %s32
      %s21 = sphi 0, %s28
      %s22 = sphi 0, %s20
      %s23 = sphi 0, %s21
      %s24 = sphi 0, %s22
      %s25 = sphi 0, %s23
      %s39 = sphi 0, %s41
      %s42 = sphi 0, %s39
      %s43 = sphi 0, %s42
      %s59 = sphi 0, %s43
      %s65 = sphi 0, %s67
      %s68 = sphi 0, %s65
      %s69 = sphi 0, %s68
      %s85 = sphi 0, %s69
      %s89 = sphi 0, %s89
      %s91 = sphi 0, %s89
      %s92 = sphi 0, %s91
      %s106 = sphi 0, %s92
      %s110 = sphi 0, %s110
      %s112 = sphi 0, %s110
      %s113 = sphi 0, %s112
      %s127 = sphi 0, %s113
      %s135 = sphi 0, %s137
      %s138 = sphi 0, %s135
      %s139 = sphi 0, %s138
      %s155 = sphi 0, %s139
    $region4: #{dcmm_forward.1} parent=1 // loop_header_branch
      %16 = sbr.rel (%p14) target = $region8
    $region5: #{dcmm_forward.1} parent=1 // loop_body
      %s18 = ssub.s32 %s13, 1
      %s19 = ssub.s32 %s13, 2
      %s26 = sadd.s32 1, %s21
      %p27 = scmp.ge.s32.totalorder %s26, 1
      %s28 = scalar_select %p27, 0, %s26
      %s29 = sadd.s32 1, %s20
      %s30 = scalar_select %p27, %s29, %s20
      %p31 = scmp.ge.s32.totalorder %s30, 2
      %s32 = scalar_select %p31, 0, %s30
      %s33 = ssub.s32 1, %s20
      %s34 = smul.u32 %s21, %s33
      %s35 = ssub.s32 1, %s32
      %s36 = smul.u32 %s28, %s35
      %s37 = ssub.s32 %s34, %s36
      %p38 = scmp.eq.s32.totalorder %s37, 0
      %s40 = sadd.s32 %s39, 1
      %s41 = scalar_select %p38, %s39, %s40
      %p44 = pneg %p38
      %p45 = scmp.eq.s32.totalorder %s13, 1
      %p46 = por %p44, %p45
      %p47 = scmp.ne.s32.totalorder %s39, %s42
      %p48 = scmp.eq.s32.totalorder %s13, 0
      %p49 = por %p47, %p48
      %p50 = scmp.ne.s32.totalorder %s39, %s42
      %p51 = scmp.eq.s32.totalorder %s18, 1
      %p52 = por %p50, %p51
      %p53 = scmp.ne.s32.totalorder %s42, %s43
      %p54 = scmp.eq.s32.totalorder %s18, 0
      %p55 = por %p53, %p54
      %p56 = scmp.ne.s32.totalorder %s42, %s43
      %p57 = scmp.eq.s32.totalorder %s19, 1
      %p58 = por %p56, %p57
      %p60 = scmp.ne.s32.totalorder %s43, %s59
      %p61 = scmp.eq.s32.totalorder %s19, 0
      %p62 = por %p60, %p61
      %s63 = ssub.s32 %s21, %s28
      %p64 = scmp.eq.s32.totalorder %s63, 0
      %s66 = sadd.s32 %s65, 1
      %s67 = scalar_select %p64, %s65, %s66
      %p70 = pneg %p64
      %p71 = scmp.eq.s32.totalorder %s13, 1
      %p72 = por %p70, %p71
      %p73 = scmp.ne.s32.totalorder %s65, %s68
      %p74 = scmp.eq.s32.totalorder %s13, 0
      %p75 = por %p73, %p74
      %p76 = scmp.ne.s32.totalorder %s65, %s68
      %p77 = scmp.eq.s32.totalorder %s18, 1
      %p78 = por %p76, %p77
      %p79 = scmp.ne.s32.totalorder %s68, %s69
      %p80 = scmp.eq.s32.totalorder %s18, 0
      %p81 = por %p79, %p80
      %p82 = scmp.ne.s32.totalorder %s68, %s69
      %p83 = scmp.eq.s32.totalorder %s19, 1
      %p84 = por %p82, %p83
      %p86 = scmp.ne.s32.totalorder %s69, %s85
      %p87 = scmp.eq.s32.totalorder %s19, 0
      %p88 = por %p86, %p87
      %s90 = sadd.s32 %s89, 1
      %p93 = scmp.eq.s32.totalorder %s13, 1
      %p94 = scmp.ne.s32.totalorder %s89, %s91
      %p95 = scmp.eq.s32.totalorder %s13, 0
      %p96 = por %p94, %p95
      %p97 = scmp.ne.s32.totalorder %s89, %s91
      %p98 = scmp.eq.s32.totalorder %s18, 1
      %p99 = por %p97, %p98
      %p100 = scmp.ne.s32.totalorder %s91, %s92
      %p101 = scmp.eq.s32.totalorder %s18, 0
      %p102 = por %p100, %p101
      %p103 = scmp.ne.s32.totalorder %s91, %s92
      %p104 = scmp.eq.s32.totalorder %s19, 1
      %p105 = por %p103, %p104
      %p107 = scmp.ne.s32.totalorder %s92, %s106
      %p108 = scmp.eq.s32.totalorder %s19, 0
      %p109 = por %p107, %p108
      %s111 = sadd.s32 %s110, 1
      %p114 = scmp.eq.s32.totalorder %s13, 1
      %p115 = scmp.ne.s32.totalorder %s110, %s112
      %p116 = scmp.eq.s32.totalorder %s13, 0
      %p117 = por %p115, %p116
      %p118 = scmp.ne.s32.totalorder %s110, %s112
      %p119 = scmp.eq.s32.totalorder %s18, 1
      %p120 = por %p118, %p119
      %p121 = scmp.ne.s32.totalorder %s112, %s113
      %p122 = scmp.eq.s32.totalorder %s18, 0
      %p123 = por %p121, %p122
      %p124 = scmp.ne.s32.totalorder %s112, %s113
      %p125 = scmp.eq.s32.totalorder %s19, 1
      %p126 = por %p124, %p125
      %p128 = scmp.ne.s32.totalorder %s113, %s127
      %p129 = scmp.eq.s32.totalorder %s19, 0
      %p130 = por %p128, %p129
      %s131 = smul.u32 %s21, %s20
      %s132 = smul.u32 %s28, %s32
      %s133 = ssub.s32 %s131, %s132
      %p134 = scmp.eq.s32.totalorder %s133, 0
      %s136 = sadd.s32 %s135, 1
      %s137 = scalar_select %p134, %s135, %s136
      %p140 = pneg %p134
      %p141 = scmp.eq.s32.totalorder %s13, 1
      %p142 = por %p140, %p141
      %p143 = scmp.ne.s32.totalorder %s135, %s138
      %p144 = scmp.eq.s32.totalorder %s13, 0
      %p145 = por %p143, %p144
      %p146 = scmp.ne.s32.totalorder %s135, %s138
      %p147 = scmp.eq.s32.totalorder %s18, 1
      %p148 = por %p146, %p147
      %p149 = scmp.ne.s32.totalorder %s138, %s139
      %p150 = scmp.eq.s32.totalorder %s18, 0
      %p151 = por %p149, %p150
      %p152 = scmp.ne.s32.totalorder %s138, %s139
      %p153 = scmp.eq.s32.totalorder %s19, 1
      %p154 = por %p152, %p153
      %p156 = scmp.ne.s32.totalorder %s139, %s155
      %p157 = scmp.eq.s32.totalorder %s19, 0
      %p158 = por %p156, %p157
      %p159 = scmp.le.s32.totalorder 1, %s13
      %p160 = scmp.lt.s32.totalorder %s13, 3
      %p161 = pnand %p159, %p160
      %p162 = pneg %p161
      // Predicated region
      $region9: #{dcmm_forward.1} parent=5 // pred_check
        _
      $region10: #{dcmm_forward.1} parent=5 // pred_check_branch
        %164 = sbr.rel (%p161) target = $region12
      $region11: #{dcmm_forward.1} parent=5 // pred_region
        %s165 = ssub.s32 %s13, 1
        // Predicated region
        $region13: #{dcmm_forward.1} parent=11 // pred_check
          %p166 = pneg %p81
        $region14: #{dcmm_forward.1} parent=11 // pred_check_branch
          %168 = sbr.rel (%p166) target = $region16
        $region15: #{dcmm_forward.1} parent=11 // pred_region
          %s169 = smul.u32 32, %s23
          %p170 = scmp.lt.s32.totalorder %s169, 31
          %s171 = scalar_select %p170, %s169, 31
          %s172 = smul.addr %s171, 8
          %s173 = scalar_lea.vmem %s1, %s172
          %s174 = smul.u32 32, %s23
        $region16: #{dcmm_forward.1} parent=11 // pred_fallthru
          _
        // Predicated region
        $region17: #{dcmm_forward.1} parent=11 // pred_check
          %p175 = pneg %p102
        $region18: #{dcmm_forward.1} parent=11 // pred_check_branch
          %177 = sbr.rel (%p175) target = $region20
        $region19: #{dcmm_forward.1} parent=11 // pred_region
          _
        $region20: #{dcmm_forward.1} parent=11 // pred_fallthru
          _
        // Predicated region
        $region21: #{dcmm_forward.1} parent=11 // pred_check
          %p178 = pneg %p123
        $region22: #{dcmm_forward.1} parent=11 // pred_check_branch
          %180 = sbr.rel (%p178) target = $region24
        $region23: #{dcmm_forward.1} parent=11 // pred_region
          _
        $region24: #{dcmm_forward.1} parent=11 // pred_fallthru
          _
      $region12: #{dcmm_forward.1} parent=5 // pred_fallthru
        _
      %p181 = scmp.lt.s32.totalorder %s13, 2
      // Predicated region
      $region25: #{dcmm_forward.1} parent=5 // pred_check
        %p182 = pneg %p181
      $region26: #{dcmm_forward.1} parent=5 // pred_check_branch
        %184 = sbr.rel (%p182) target = $region28
      $region27: #{dcmm_forward.1} parent=5 // pred_region
        // Predicated region
        $region29: #{dcmm_forward.1} parent=27 // pred_check
          %p185 = pneg %p49
        $region30: #{dcmm_forward.1} parent=27 // pred_check_branch
          %187 = sbr.rel (%p185) target = $region32
        $region31: #{dcmm_forward.1} parent=27 // pred_region
          %s188 = ssub.s32 1, %s20
          %s189 = smul.u32 %s21, %s188
          %s190 = smul.u32 32, %s189
          %p191 = scmp.lt.s32.totalorder %s190, 31
          %s192 = scalar_select %p191, %s190, 31
          %s193 = smul.addr %s192, 8
          %s194 = scalar_lea.vmem %s0, %s193
          %s195 = ssub.s32 1, %s20
          %s196 = smul.u32 %s21, %s195
          %s197 = smul.u32 32, %s196
        $region32: #{dcmm_forward.1} parent=27 // pred_fallthru
          _
      $region28: #{dcmm_forward.1} parent=5 // pred_fallthru
        _
      %p198 = scmp.le.s32.totalorder 1, %s13
      %p199 = scmp.lt.s32.totalorder %s13, 3
      %p200 = pnand %p198, %p199
      %p201 = pneg %p200
      // Predicated region
      $region33: #{dcmm_forward.1} parent=5 // pred_check
        _
      $region34: #{dcmm_forward.1} parent=5 // pred_check_branch
        %203 = sbr.rel (%p200) target = $region36
      $region35: #{dcmm_forward.1} parent=5 // pred_region
        %s204 = ssub.s32 %s13, 1
        %s205 = ssub.s32 1, %s22
        %s206 = smul.u32 %s23, %s205
        %s207 = smul.u32 32, %s206
        %p208 = scmp.lt.s32.totalorder %s207, 31
        %s209 = scalar_select %p208, %s207, 31
        %s210 = smul.addr %s209, 8
        %s211 = scalar_lea.vmem %s0, %s210
        %p212 = pneg %p55
        %p213 = pneg %p52
        %s214 = smul.u32 32, %s23
        %p215 = scmp.lt.s32.totalorder %s214, 31
        %s216 = scalar_select %p215, %s214, 31
        %s217 = smul.addr %s216, 8
        %s218 = scalar_lea.vmem %s1, %s217
        %p219 = pneg %p81
        %p220 = pneg %p78
        %p221 = pneg %p102
        %p222 = pneg %p99
        %p223 = pneg %p123
        %p224 = pneg %p120
        %p225 = pneg %p151
        %p226 = pneg %p148
        %s227 = sand.u32 %s138, 1
        %s228 = scalar_lea.sflag [#allocation5], %s227
        %s229 = sand.u32 %s138, 1
        %s230 = smul.addr %s229, 2
        %s231 = scalar_lea.vmem [#allocation4], %s230
        %s232 = ssub.s32 1, %s22
        %s233 = smul.u32 %s23, %s232
        %s234 = smul.u32 32, %s233
        %p235 = scmp.lt.s32.totalorder %s234, 31
        %s236 = scalar_select %p235, %s234, 31
        %s237 = smul.addr %s236, 8
        %s238 = scalar_lea.vmem %s0, %s237
        %s239 = ssub.s32 1, %s22
        %s240 = smul.u32 %s23, %s239
        %s241 = smul.u32 32, %s240
        %s242 = smul.u32 32, %s23
        %p243 = scmp.lt.s32.totalorder %s242, 31
        %s244 = scalar_select %p243, %s242, 31
        %s245 = smul.addr %s244, 8
        %s246 = scalar_lea.vmem %s1, %s245
        %s247 = smul.u32 32, %s23
        %s248 = smul.u32 %s23, %s22
        %s249 = smul.u32 2, %s248
        %v250 = vld [vmem:[%s246] sm:$0xff]
        %v251 = vld [vmem:[%s246 + $0x8] sm:$0xff]
        %v252 = vld [vmem:[%s246 + $0x10] sm:$0xff]
        %v253 = vld [vmem:[%s246 + $0x18] sm:$0xff]
        %v254 = vld [vmem:[%s246 + $0x20] sm:$0xff]
        %v255 = vld [vmem:[%s246 + $0x28] sm:$0xff]
        %v256 = vld [vmem:[%s246 + $0x30] sm:$0xff]
        %v257 = vld [vmem:[%s246 + $0x38] sm:$0xff]
        %v258 = vld [vmem:[%s246 + $0x40] sm:$0xff]
        %v259 = vld [vmem:[%s246 + $0x48] sm:$0xff]
        %v260 = vld [vmem:[%s246 + $0x50] sm:$0xff]
        %v261 = vld [vmem:[%s246 + $0x58] sm:$0xff]
        %v262 = vld [vmem:[%s246 + $0x60] sm:$0xff]
        %v263 = vld [vmem:[%s246 + $0x68] sm:$0xff]
        %v264 = vld [vmem:[%s246 + $0x70] sm:$0xff]
        %v265 = vld [vmem:[%s246 + $0x78] sm:$0xff]
        %v266 = vld [vmem:[%s246 + $0x80] sm:$0xff]
        %v267 = vld [vmem:[%s246 + $0x88] sm:$0xff]
        %v268 = vld [vmem:[%s246 + $0x90] sm:$0xff]
        %v269 = vld [vmem:[%s246 + $0x98] sm:$0xff]
        %v270 = vld [vmem:[%s246 + $0xa0] sm:$0xff]
        %v271 = vld [vmem:[%s246 + $0xa8] sm:$0xff]
        %v272 = vld [vmem:[%s246 + $0xb0] sm:$0xff]
        %v273 = vld [vmem:[%s246 + $0xb8] sm:$0xff]
        %v274 = vld [vmem:[%s246 + $0xc0] sm:$0xff]
        %v275 = vld [vmem:[%s246 + $0xc8] sm:$0xff]
        %v276 = vld [vmem:[%s246 + $0xd0] sm:$0xff]
        %v277 = vld [vmem:[%s246 + $0xd8] sm:$0xff]
        %v278 = vld [vmem:[%s246 + $0xe0] sm:$0xff]
        %v279 = vld [vmem:[%s246 + $0xe8] sm:$0xff]
        %v280 = vld [vmem:[%s246 + $0xf0] sm:$0xff]
        %v281 = vld [vmem:[%s246 + $0xf8] sm:$0xff]
        %v282 = vmul.f32 %v250, %v250
        %v283 = vmul.f32 %v251, %v251
        %v284 = vmul.f32 %v252, %v252
        %v285 = vmul.f32 %v253, %v253
        %v286 = vmul.f32 %v254, %v254
        %v287 = vmul.f32 %v255, %v255
        %v288 = vmul.f32 %v256, %v256
        %v289 = vmul.f32 %v257, %v257
        %v290 = vmul.f32 %v258, %v258
        %v291 = vmul.f32 %v259, %v259
        %v292 = vmul.f32 %v260, %v260
        %v293 = vmul.f32 %v261, %v261
        %v294 = vmul.f32 %v262, %v262
        %v295 = vmul.f32 %v263, %v263
        %v296 = vmul.f32 %v264, %v264
        %v297 = vmul.f32 %v265, %v265
        %v298 = vmul.f32 %v266, %v266
        %v299 = vmul.f32 %v267, %v267
        %v300 = vmul.f32 %v268, %v268
        %v301 = vmul.f32 %v269, %v269
        %v302 = vmul.f32 %v270, %v270
        %v303 = vmul.f32 %v271, %v271
        %v304 = vmul.f32 %v272, %v272
        %v305 = vmul.f32 %v273, %v273
        %v306 = vmul.f32 %v274, %v274
        %v307 = vmul.f32 %v275, %v275
        %v308 = vmul.f32 %v276, %v276
        %v309 = vmul.f32 %v277, %v277
        %v310 = vmul.f32 %v278, %v278
        %v311 = vmul.f32 %v279, %v279
        %v312 = vmul.f32 %v280, %v280
        %v313 = vmul.f32 %v281, %v281
        %vm314 = vcmask 261120
        %v315 = vsel %vm314, %v282, 0.0
        %316 = vadd.xlane.f32.xlu0 %v315
        %v317 = vpop.xlane.xlu0 %316
        %v318 = vsel %vm314, %v283, 0.0
        %319 = vadd.xlane.f32.xlu0 %v318
        %v320 = vpop.xlane.xlu0 %319
        %v321 = vsel %vm314, %v284, 0.0
        %322 = vadd.xlane.f32.xlu0 %v321
        %v323 = vpop.xlane.xlu0 %322
        %v324 = vsel %vm314, %v285, 0.0
        %325 = vadd.xlane.f32.xlu0 %v324
        %v326 = vpop.xlane.xlu0 %325
        %v327 = vsel %vm314, %v286, 0.0
        %328 = vadd.xlane.f32.xlu0 %v327
        %v329 = vpop.xlane.xlu0 %328
        %v330 = vsel %vm314, %v287, 0.0
        %331 = vadd.xlane.f32.xlu0 %v330
        %v332 = vpop.xlane.xlu0 %331
        %v333 = vsel %vm314, %v288, 0.0
        %334 = vadd.xlane.f32.xlu0 %v333
        %v335 = vpop.xlane.xlu0 %334
        %v336 = vsel %vm314, %v289, 0.0
        %337 = vadd.xlane.f32.xlu0 %v336
        %v338 = vpop.xlane.xlu0 %337
        %v339 = vsel %vm314, %v290, 0.0
        %340 = vadd.xlane.f32.xlu0 %v339
        %v341 = vpop.xlane.xlu0 %340
        %v342 = vsel %vm314, %v291, 0.0
        %343 = vadd.xlane.f32.xlu0 %v342
        %v344 = vpop.xlane.xlu0 %343
        %v345 = vsel %vm314, %v292, 0.0
        %346 = vadd.xlane.f32.xlu0 %v345
        %v347 = vpop.xlane.xlu0 %346
        %v348 = vsel %vm314, %v293, 0.0
        %349 = vadd.xlane.f32.xlu0 %v348
        %v350 = vpop.xlane.xlu0 %349
        %v351 = vsel %vm314, %v294, 0.0
        %352 = vadd.xlane.f32.xlu0 %v351
        %v353 = vpop.xlane.xlu0 %352
        %v354 = vsel %vm314, %v295, 0.0
        %355 = vadd.xlane.f32.xlu0 %v354
        %v356 = vpop.xlane.xlu0 %355
        %v357 = vsel %vm314, %v296, 0.0
        %358 = vadd.xlane.f32.xlu0 %v357
        %v359 = vpop.xlane.xlu0 %358
        %v360 = vsel %vm314, %v297, 0.0
        %361 = vadd.xlane.f32.xlu0 %v360
        %v362 = vpop.xlane.xlu0 %361
        %v363 = vsel %vm314, %v298, 0.0
        %364 = vadd.xlane.f32.xlu0 %v363
        %v365 = vpop.xlane.xlu0 %364
        %v366 = vsel %vm314, %v299, 0.0
        %367 = vadd.xlane.f32.xlu0 %v366
        %v368 = vpop.xlane.xlu0 %367
        %v369 = vsel %vm314, %v300, 0.0
        %370 = vadd.xlane.f32.xlu0 %v369
        %v371 = vpop.xlane.xlu0 %370
        %v372 = vsel %vm314, %v301, 0.0
        %373 = vadd.xlane.f32.xlu0 %v372
        %v374 = vpop.xlane.xlu0 %373
        %v375 = vsel %vm314, %v302, 0.0
        %376 = vadd.xlane.f32.xlu0 %v375
        %v377 = vpop.xlane.xlu0 %376
        %v378 = vsel %vm314, %v303, 0.0
        %379 = vadd.xlane.f32.xlu0 %v378
        %v380 = vpop.xlane.xlu0 %379
        %v381 = vsel %vm314, %v304, 0.0
        %382 = vadd.xlane.f32.xlu0 %v381
        %v383 = vpop.xlane.xlu0 %382
        %v384 = vsel %vm314, %v305, 0.0
        %385 = vadd.xlane.f32.xlu0 %v384
        %v386 = vpop.xlane.xlu0 %385
        %v387 = vsel %vm314, %v306, 0.0
        %388 = vadd.xlane.f32.xlu0 %v387
        %v389 = vpop.xlane.xlu0 %388
        %v390 = vsel %vm314, %v307, 0.0
        %391 = vadd.xlane.f32.xlu0 %v390
        %v392 = vpop.xlane.xlu0 %391
        %v393 = vsel %vm314, %v308, 0.0
        %394 = vadd.xlane.f32.xlu0 %v393
        %v395 = vpop.xlane.xlu0 %394
        %v396 = vsel %vm314, %v309, 0.0
        %397 = vadd.xlane.f32.xlu0 %v396
        %v398 = vpop.xlane.xlu0 %397
        %v399 = vsel %vm314, %v310, 0.0
        %400 = vadd.xlane.f32.xlu0 %v399
        %v401 = vpop.xlane.xlu0 %400
        %v402 = vsel %vm314, %v311, 0.0
        %403 = vadd.xlane.f32.xlu0 %v402
        %v404 = vpop.xlane.xlu0 %403
        %v405 = vsel %vm314, %v312, 0.0
        %406 = vadd.xlane.f32.xlu0 %v405
        %v407 = vpop.xlane.xlu0 %406
        %v408 = vsel %vm314, %v313, 0.0
        %409 = vadd.xlane.f32.xlu0 %v408
        %v410 = vpop.xlane.xlu0 %409
        %v411 = vadd.f32 %v317, 1e-12
        %v412 = vadd.f32 %v320, 1e-12
        %v413 = vadd.f32 %v323, 1e-12
        %v414 = vadd.f32 %v326, 1e-12
        %v415 = vadd.f32 %v329, 1e-12
        %v416 = vadd.f32 %v332, 1e-12
        %v417 = vadd.f32 %v335, 1e-12
        %v418 = vadd.f32 %v338, 1e-12
        %v419 = vadd.f32 %v341, 1e-12
        %v420 = vadd.f32 %v344, 1e-12
        %v421 = vadd.f32 %v347, 1e-12
        %v422 = vadd.f32 %v350, 1e-12
        %v423 = vadd.f32 %v353, 1e-12
        %v424 = vadd.f32 %v356, 1e-12
        %v425 = vadd.f32 %v359, 1e-12
        %v426 = vadd.f32 %v362, 1e-12
        %v427 = vadd.f32 %v365, 1e-12
        %v428 = vadd.f32 %v368, 1e-12
        %v429 = vadd.f32 %v371, 1e-12
        %v430 = vadd.f32 %v374, 1e-12
        %v431 = vadd.f32 %v377, 1e-12
        %v432 = vadd.f32 %v380, 1e-12
        %v433 = vadd.f32 %v383, 1e-12
        %v434 = vadd.f32 %v386, 1e-12
        %v435 = vadd.f32 %v389, 1e-12
        %v436 = vadd.f32 %v392, 1e-12
        %v437 = vadd.f32 %v395, 1e-12
        %v438 = vadd.f32 %v398, 1e-12
        %v439 = vadd.f32 %v401, 1e-12
        %v440 = vadd.f32 %v404, 1e-12
        %v441 = vadd.f32 %v407, 1e-12
        %v442 = vadd.f32 %v410, 1e-12
        %v443 = vrsqrt.pop %v411
        %v444 = vrsqrt.pop %v412
        %v445 = vrsqrt.pop %v413
        %v446 = vrsqrt.pop %v414
        %v447 = vrsqrt.pop %v415
        %v448 = vrsqrt.pop %v416
        %v449 = vrsqrt.pop %v417
        %v450 = vrsqrt.pop %v418
        %v451 = vrsqrt.pop %v419
        %v452 = vrsqrt.pop %v420
        %v453 = vrsqrt.pop %v421
        %v454 = vrsqrt.pop %v422
        %v455 = vrsqrt.pop %v423
        %v456 = vrsqrt.pop %v424
        %v457 = vrsqrt.pop %v425
        %v458 = vrsqrt.pop %v426
        %v459 = vrsqrt.pop %v427
        %v460 = vrsqrt.pop %v428
        %v461 = vrsqrt.pop %v429
        %v462 = vrsqrt.pop %v430
        %v463 = vrsqrt.pop %v431
        %v464 = vrsqrt.pop %v432
        %v465 = vrsqrt.pop %v433
        %v466 = vrsqrt.pop %v434
        %v467 = vrsqrt.pop %v435
        %v468 = vrsqrt.pop %v436
        %v469 = vrsqrt.pop %v437
        %v470 = vrsqrt.pop %v438
        %v471 = vrsqrt.pop %v439
        %v472 = vrsqrt.pop %v440
        %v473 = vrsqrt.pop %v441
        %v474 = vrsqrt.pop %v442
        %v475 = vmul.f32 %v250, %v443
        %v476 = vmul.f32 %v251, %v444
        %v477 = vmul.f32 %v252, %v445
        %v478 = vmul.f32 %v253, %v446
        %v479 = vmul.f32 %v254, %v447
        %v480 = vmul.f32 %v255, %v448
        %v481 = vmul.f32 %v256, %v449
        %v482 = vmul.f32 %v257, %v450
        %v483 = vmul.f32 %v258, %v451
        %v484 = vmul.f32 %v259, %v452
        %v485 = vmul.f32 %v260, %v453
        %v486 = vmul.f32 %v261, %v454
        %v487 = vmul.f32 %v262, %v455
        %v488 = vmul.f32 %v263, %v456
        %v489 = vmul.f32 %v264, %v457
        %v490 = vmul.f32 %v265, %v458
        %v491 = vmul.f32 %v266, %v459
        %v492 = vmul.f32 %v267, %v460
        %v493 = vmul.f32 %v268, %v461
        %v494 = vmul.f32 %v269, %v462
        %v495 = vmul.f32 %v270, %v463
        %v496 = vmul.f32 %v271, %v464
        %v497 = vmul.f32 %v272, %v465
        %v498 = vmul.f32 %v273, %v466
        %v499 = vmul.f32 %v274, %v467
        %v500 = vmul.f32 %v275, %v468
        %v501 = vmul.f32 %v276, %v469
        %v502 = vmul.f32 %v277, %v470
        %v503 = vmul.f32 %v278, %v471
        %v504 = vmul.f32 %v279, %v472
        %v505 = vmul.f32 %v280, %v473
        %v506 = vmul.f32 %v281, %v474
        %s507 = smul.u32 %s23, 256
        %v508 = vlaneseq
        %v509 = vshrl.u32 %v508, 7
        %v510 = vadd.s32 %v509, 8
        %v511 = vadd.s32 %v509, 16
        %v512 = vadd.s32 %v509, 24
        %v513 = vadd.s32 %v509, 32
        %v514 = vadd.s32 %v509, 40
        %v515 = vadd.s32 %v509, 48
        %v516 = vadd.s32 %v509, 56
        %v517 = vadd.s32 %v509, 64
        %v518 = vadd.s32 %v509, 72
        %v519 = vadd.s32 %v509, 80
        %v520 = vadd.s32 %v509, 88
        %v521 = vadd.s32 %v509, 96
        %v522 = vadd.s32 %v509, 104
        %v523 = vadd.s32 %v509, 112
        %v524 = vadd.s32 %v509, 120
        %v525 = vadd.s32 %v509, 128
        %v526 = vadd.s32 %v509, 136
        %v527 = vadd.s32 %v509, 144
        %v528 = vadd.s32 %v509, 152
        %v529 = vadd.s32 %v509, 160
        %v530 = vadd.s32 %v509, 168
        %v531 = vadd.s32 %v509, 176
        %v532 = vadd.s32 %v509, 184
        %v533 = vadd.s32 %v509, 192
        %v534 = vadd.s32 %v509, 200
        %v535 = vadd.s32 %v509, 208
        %v536 = vadd.s32 %v509, 216
        %v537 = vadd.s32 %v509, 224
        %v538 = vadd.s32 %v509, 232
        %v539 = vadd.s32 %v509, 240
        %v540 = vadd.s32 %v509, 248
        %v541 = vstv %s507
        %v542 = vadd.s32 %v541, %v509
        %v543 = vadd.s32 %v541, %v510
        %v544 = vadd.s32 %v541, %v511
        %v545 = vadd.s32 %v541, %v512
        %v546 = vadd.s32 %v541, %v513
        %v547 = vadd.s32 %v541, %v514
        %v548 = vadd.s32 %v541, %v515
        %v549 = vadd.s32 %v541, %v516
        %v550 = vadd.s32 %v541, %v517
        %v551 = vadd.s32 %v541, %v518
        %v552 = vadd.s32 %v541, %v519
        %v553 = vadd.s32 %v541, %v520
        %v554 = vadd.s32 %v541, %v521
        %v555 = vadd.s32 %v541, %v522
        %v556 = vadd.s32 %v541, %v523
        %v557 = vadd.s32 %v541, %v524
        %v558 = vadd.s32 %v541, %v525
        %v559 = vadd.s32 %v541, %v526
        %v560 = vadd.s32 %v541, %v527
        %v561 = vadd.s32 %v541, %v528
        %v562 = vadd.s32 %v541, %v529
        %v563 = vadd.s32 %v541, %v530
        %v564 = vadd.s32 %v541, %v531
        %v565 = vadd.s32 %v541, %v532
        %v566 = vadd.s32 %v541, %v533
        %v567 = vadd.s32 %v541, %v534
        %v568 = vadd.s32 %v541, %v535
        %v569 = vadd.s32 %v541, %v536
        %v570 = vadd.s32 %v541, %v537
        %v571 = vadd.s32 %v541, %v538
        %v572 = vadd.s32 %v541, %v539
        %v573 = vadd.s32 %v541, %v540
        %v574 = vlaneseq
        %v575 = vand.u32 %v574, 127
        %v576 = vadd.s32 %v575, 128
        %v577 = vadd.s32 %v541, %v575
        %v578 = vadd.s32 %v541, %v576
        %vm579 = vcmp.lt.s32.totalorder %v542, 256
        %vm580 = vcmp.lt.s32.totalorder %v543, 256
        %vm581 = vcmp.lt.s32.totalorder %v544, 256
        %vm582 = vcmp.lt.s32.totalorder %v545, 256
        %vm583 = vcmp.lt.s32.totalorder %v546, 256
        %vm584 = vcmp.lt.s32.totalorder %v547, 256
        %vm585 = vcmp.lt.s32.totalorder %v548, 256
        %vm586 = vcmp.lt.s32.totalorder %v549, 256
        %vm587 = vcmp.lt.s32.totalorder %v550, 256
        %vm588 = vcmp.lt.s32.totalorder %v551, 256
        %vm589 = vcmp.lt.s32.totalorder %v552, 256
        %vm590 = vcmp.lt.s32.totalorder %v553, 256
        %vm591 = vcmp.lt.s32.totalorder %v554, 256
        %vm592 = vcmp.lt.s32.totalorder %v555, 256
        %vm593 = vcmp.lt.s32.totalorder %v556, 256
        %vm594 = vcmp.lt.s32.totalorder %v557, 256
        %vm595 = vcmp.lt.s32.totalorder %v558, 256
        %vm596 = vcmp.lt.s32.totalorder %v559, 256
        %vm597 = vcmp.lt.s32.totalorder %v560, 256
        %vm598 = vcmp.lt.s32.totalorder %v561, 256
        %vm599 = vcmp.lt.s32.totalorder %v562, 256
        %vm600 = vcmp.lt.s32.totalorder %v563, 256
        %vm601 = vcmp.lt.s32.totalorder %v564, 256
        %vm602 = vcmp.lt.s32.totalorder %v565, 256
        %vm603 = vcmp.lt.s32.totalorder %v566, 256
        %vm604 = vcmp.lt.s32.totalorder %v567, 256
        %vm605 = vcmp.lt.s32.totalorder %v568, 256
        %vm606 = vcmp.lt.s32.totalorder %v569, 256
        %vm607 = vcmp.lt.s32.totalorder %v570, 256
        %vm608 = vcmp.lt.s32.totalorder %v571, 256
        %vm609 = vcmp.lt.s32.totalorder %v572, 256
        %vm610 = vcmp.lt.s32.totalorder %v573, 256
        %v611 = vsel %vm579, 1, 0
        %v612 = vsel %vm580, 1, 0
        %v613 = vsel %vm581, 1, 0
        %v614 = vsel %vm582, 1, 0
        %v615 = vsel %vm583, 1, 0
        %v616 = vsel %vm584, 1, 0
        %v617 = vsel %vm585, 1, 0
        %v618 = vsel %vm586, 1, 0
        %v619 = vsel %vm587, 1, 0
        %v620 = vsel %vm588, 1, 0
        %v621 = vsel %vm589, 1, 0
        %v622 = vsel %vm590, 1, 0
        %v623 = vsel %vm591, 1, 0
        %v624 = vsel %vm592, 1, 0
        %v625 = vsel %vm593, 1, 0
        %v626 = vsel %vm594, 1, 0
        %v627 = vsel %vm595, 1, 0
        %v628 = vsel %vm596, 1, 0
        %v629 = vsel %vm597, 1, 0
        %v630 = vsel %vm598, 1, 0
        %v631 = vsel %vm599, 1, 0
        %v632 = vsel %vm600, 1, 0
        %v633 = vsel %vm601, 1, 0
        %v634 = vsel %vm602, 1, 0
        %v635 = vsel %vm603, 1, 0
        %v636 = vsel %vm604, 1, 0
        %v637 = vsel %vm605, 1, 0
        %v638 = vsel %vm606, 1, 0
        %v639 = vsel %vm607, 1, 0
        %v640 = vsel %vm608, 1, 0
        %v641 = vsel %vm609, 1, 0
        %v642 = vsel %vm610, 1, 0
        %vm643 = vcmp.eq.s32.totalorder %v611, 1
        %vm644 = vcmp.eq.s32.totalorder %v612, 1
        %vm645 = vcmp.eq.s32.totalorder %v613, 1
        %vm646 = vcmp.eq.s32.totalorder %v614, 1
        %vm647 = vcmp.eq.s32.totalorder %v615, 1
        %vm648 = vcmp.eq.s32.totalorder %v616, 1
        %vm649 = vcmp.eq.s32.totalorder %v617, 1
        %vm650 = vcmp.eq.s32.totalorder %v618, 1
        %vm651 = vcmp.eq.s32.totalorder %v619, 1
        %vm652 = vcmp.eq.s32.totalorder %v620, 1
        %vm653 = vcmp.eq.s32.totalorder %v621, 1
        %vm654 = vcmp.eq.s32.totalorder %v622, 1
        %vm655 = vcmp.eq.s32.totalorder %v623, 1
        %vm656 = vcmp.eq.s32.totalorder %v624, 1
        %vm657 = vcmp.eq.s32.totalorder %v625, 1
        %vm658 = vcmp.eq.s32.totalorder %v626, 1
        %vm659 = vcmp.eq.s32.totalorder %v627, 1
        %vm660 = vcmp.eq.s32.totalorder %v628, 1
        %vm661 = vcmp.eq.s32.totalorder %v629, 1
        %vm662 = vcmp.eq.s32.totalorder %v630, 1
        %vm663 = vcmp.eq.s32.totalorder %v631, 1
        %vm664 = vcmp.eq.s32.totalorder %v632, 1
        %vm665 = vcmp.eq.s32.totalorder %v633, 1
        %vm666 = vcmp.eq.s32.totalorder %v634, 1
        %vm667 = vcmp.eq.s32.totalorder %v635, 1
        %vm668 = vcmp.eq.s32.totalorder %v636, 1
        %vm669 = vcmp.eq.s32.totalorder %v637, 1
        %vm670 = vcmp.eq.s32.totalorder %v638, 1
        %vm671 = vcmp.eq.s32.totalorder %v639, 1
        %vm672 = vcmp.eq.s32.totalorder %v640, 1
        %vm673 = vcmp.eq.s32.totalorder %v641, 1
        %vm674 = vcmp.eq.s32.totalorder %v642, 1
        %v675 = vsel %vm643, %v475, 0.0
        %v676 = vsel %vm644, %v476, 0.0
        %v677 = vsel %vm645, %v477, 0.0
        %v678 = vsel %vm646, %v478, 0.0
        %v679 = vsel %vm647, %v479, 0.0
        %v680 = vsel %vm648, %v480, 0.0
        %v681 = vsel %vm649, %v481, 0.0
        %v682 = vsel %vm650, %v482, 0.0
        %v683 = vsel %vm651, %v483, 0.0
        %v684 = vsel %vm652, %v484, 0.0
        %v685 = vsel %vm653, %v485, 0.0
        %v686 = vsel %vm654, %v486, 0.0
        %v687 = vsel %vm655, %v487, 0.0
        %v688 = vsel %vm656, %v488, 0.0
        %v689 = vsel %vm657, %v489, 0.0
        %v690 = vsel %vm658, %v490, 0.0
        %v691 = vsel %vm659, %v491, 0.0
        %v692 = vsel %vm660, %v492, 0.0
        %v693 = vsel %vm661, %v493, 0.0
        %v694 = vsel %vm662, %v494, 0.0
        %v695 = vsel %vm663, %v495, 0.0
        %v696 = vsel %vm664, %v496, 0.0
        %v697 = vsel %vm665, %v497, 0.0
        %v698 = vsel %vm666, %v498, 0.0
        %v699 = vsel %vm667, %v499, 0.0
        %v700 = vsel %vm668, %v500, 0.0
        %v701 = vsel %vm669, %v501, 0.0
        %v702 = vsel %vm670, %v502, 0.0
        %v703 = vsel %vm671, %v503, 0.0
        %v704 = vsel %vm672, %v504, 0.0
        %v705 = vsel %vm673, %v505, 0.0
        %v706 = vsel %vm674, %v506, 0.0
        %p707 = scmp.eq.s32.totalorder %s22, 0
        // Predicated region
        $region37: #{dcmm_forward.1} parent=35 // pred_check
          %p708 = pneg %p707
        $region38: #{dcmm_forward.1} parent=35 // pred_check_branch
          %710 = sbr.rel (%p708) target = $region40
        $region39: #{dcmm_forward.1} parent=35 // pred_region
          %p711 = scmp.eq.s32.totalorder %s23, 0
          // Predicated region
          $region41: #{dcmm_forward.1} parent=39 // pred_check
            %p712 = pneg %p711
          $region42: #{dcmm_forward.1} parent=39 // pred_check_branch
            %714 = sbr.rel (%p712) target = $region44
          $region43: #{dcmm_forward.1} parent=39 // pred_region
            %vm715 = vcmask 253952
            %716 = vst.msk [vmem:[#allocation3] sm:$0x1] %vm715, 0.0
          $region44: #{dcmm_forward.1} parent=39 // pred_fallthru
            _
          %v717 = vld [vmem:[%s238] sm:$0xff]
          %v718 = vld [vmem:[%s238 + $0x8] sm:$0xff]
          %v719 = vld [vmem:[%s238 + $0x10] sm:$0xff]
          %v720 = vld [vmem:[%s238 + $0x18] sm:$0xff]
          %v721 = vld [vmem:[%s238 + $0x20] sm:$0xff]
          %v722 = vld [vmem:[%s238 + $0x28] sm:$0xff]
          %v723 = vld [vmem:[%s238 + $0x30] sm:$0xff]
          %v724 = vld [vmem:[%s238 + $0x38] sm:$0xff]
          %v725 = vld [vmem:[%s238 + $0x40] sm:$0xff]
          %v726 = vld [vmem:[%s238 + $0x48] sm:$0xff]
          %v727 = vld [vmem:[%s238 + $0x50] sm:$0xff]
          %v728 = vld [vmem:[%s238 + $0x58] sm:$0xff]
          %v729 = vld [vmem:[%s238 + $0x60] sm:$0xff]
          %v730 = vld [vmem:[%s238 + $0x68] sm:$0xff]
          %v731 = vld [vmem:[%s238 + $0x70] sm:$0xff]
          %v732 = vld [vmem:[%s238 + $0x78] sm:$0xff]
          %v733 = vld [vmem:[%s238 + $0x80] sm:$0xff]
          %v734 = vld [vmem:[%s238 + $0x88] sm:$0xff]
          %v735 = vld [vmem:[%s238 + $0x90] sm:$0xff]
          %v736 = vld [vmem:[%s238 + $0x98] sm:$0xff]
          %v737 = vld [vmem:[%s238 + $0xa0] sm:$0xff]
          %v738 = vld [vmem:[%s238 + $0xa8] sm:$0xff]
          %v739 = vld [vmem:[%s238 + $0xb0] sm:$0xff]
          %v740 = vld [vmem:[%s238 + $0xb8] sm:$0xff]
          %v741 = vld [vmem:[%s238 + $0xc0] sm:$0xff]
          %v742 = vld [vmem:[%s238 + $0xc8] sm:$0xff]
          %v743 = vld [vmem:[%s238 + $0xd0] sm:$0xff]
          %v744 = vld [vmem:[%s238 + $0xd8] sm:$0xff]
          %v745 = vld [vmem:[%s238 + $0xe0] sm:$0xff]
          %v746 = vld [vmem:[%s238 + $0xe8] sm:$0xff]
          %v747 = vld [vmem:[%s238 + $0xf0] sm:$0xff]
          %v748 = vld [vmem:[%s238 + $0xf8] sm:$0xff]
          %v749 = vld [vmem:[%s2] sm:$0x3]
          %v750 = vld [vmem:[%s3] sm:$0x3]
          %752 = vset.pattern.permute.xlu0 0
          %753 = vperm.xlu0 %752, %v750
          %v754 = vpop.permute.xlu0 %753
          %vm756 = vcmask 31744
          %v758 = vsel %vm756, %v749, 0
          %v761 = vsel %vm756, %v717, 0
          %v764 = vsel %vm756, %v718, 0
          %v767 = vsel %vm756, %v719, 0
          %v770 = vsel %vm756, %v720, 0
          %v773 = vsel %vm756, %v721, 0
          %v776 = vsel %vm756, %v722, 0
          %v779 = vsel %vm756, %v723, 0
          %v782 = vsel %vm756, %v724, 0
          %v785 = vsel %vm756, %v725, 0
          %v788 = vsel %vm756, %v726, 0
          %v791 = vsel %vm756, %v727, 0
          %v794 = vsel %vm756, %v728, 0
          %v797 = vsel %vm756, %v729, 0
          %v800 = vsel %vm756, %v730, 0
          %v803 = vsel %vm756, %v731, 0
          %v806 = vsel %vm756, %v732, 0
          %v809 = vsel %vm756, %v733, 0
          %v812 = vsel %vm756, %v734, 0
          %v815 = vsel %vm756, %v735, 0
          %v818 = vsel %vm756, %v736, 0
          %v821 = vsel %vm756, %v737, 0
          %v824 = vsel %vm756, %v738, 0
          %v827 = vsel %vm756, %v739, 0
          %v830 = vsel %vm756, %v740, 0
          %v833 = vsel %vm756, %v741, 0
          %v836 = vsel %vm756, %v742, 0
          %v839 = vsel %vm756, %v743, 0
          %v842 = vsel %vm756, %v744, 0
          %v845 = vsel %vm756, %v745, 0
          %v848 = vsel %vm756, %v746, 0
          %v851 = vsel %vm756, %v747, 0
          %v854 = vsel %vm756, %v748, 0
          %856 = vmatprep.subr.mxu0 0.0
          %857 = vmatpush1.xpose.msra.mxu0 %v761
          %858 = vmatprep.subr.mxu0 0.0
          %859 = vmatpush1.xpose.msra.mxu0 %v764
          %860 = vmatprep.subr.mxu0 0.0
          %861 = vmatpush1.xpose.msra.mxu0 %v767
          %862 = vmatprep.subr.mxu0 0.0
          %863 = vmatpush1.xpose.msra.mxu0 %v770
          %864 = vmatprep.subr.mxu0 0.0
          %865 = vmatpush1.xpose.msra.mxu0 %v773
          %866 = vmatprep.subr.mxu0 0.0
          %867 = vmatpush1.xpose.msra.mxu0 %v776
          %868 = vmatprep.subr.mxu0 0.0
          %869 = vmatpush1.xpose.msra.mxu0 %v779
          %870 = vmatprep.subr.mxu0 0.0
          %871 = vmatpush1.xpose.msra.mxu0 %v782
          %872 = vmatprep.subr.mxu0 0.0
          %873 = vmatpush1.xpose.msra.mxu0 %v785
          %874 = vmatprep.subr.mxu0 0.0
          %875 = vmatpush1.xpose.msra.mxu0 %v788
          %876 = vmatprep.subr.mxu0 0.0
          %877 = vmatpush1.xpose.msra.mxu0 %v791
          %878 = vmatprep.subr.mxu0 0.0
          %879 = vmatpush1.xpose.msra.mxu0 %v794
          %880 = vmatprep.subr.mxu0 0.0
          %881 = vmatpush1.xpose.msra.mxu0 %v797
          %882 = vmatprep.subr.mxu0 0.0
          %883 = vmatpush1.xpose.msra.mxu0 %v800
          %884 = vmatprep.subr.mxu0 0.0
          %885 = vmatpush1.xpose.msra.mxu0 %v803
          %886 = vmatprep.subr.mxu0 0.0
          %887 = vmatpush1.xpose.msra.mxu0 %v806
          %888 = vmatprep.subr.mxu0 0.0
          %889 = vmatpush1.xpose.msra.mxu0 %v809
          %890 = vmatprep.subr.mxu0 0.0
          %891 = vmatpush1.xpose.msra.mxu0 %v812
          %892 = vmatprep.subr.mxu0 0.0
          %893 = vmatpush1.xpose.msra.mxu0 %v815
          %894 = vmatprep.subr.mxu0 0.0
          %895 = vmatpush1.xpose.msra.mxu0 %v818
          %896 = vmatprep.subr.mxu0 0.0
          %897 = vmatpush1.xpose.msra.mxu0 %v821
          %898 = vmatprep.subr.mxu0 0.0
          %899 = vmatpush1.xpose.msra.mxu0 %v824
          %900 = vmatprep.subr.mxu0 0.0
          %901 = vmatpush1.xpose.msra.mxu0 %v827
          %902 = vmatprep.subr.mxu0 0.0
          %903 = vmatpush1.xpose.msra.mxu0 %v830
          %904 = vmatprep.subr.mxu0 0.0
          %905 = vmatpush1.xpose.msra.mxu0 %v833
          %906 = vmatprep.subr.mxu0 0.0
          %907 = vmatpush1.xpose.msra.mxu0 %v836
          %908 = vmatprep.subr.mxu0 0.0
          %909 = vmatpush1.xpose.msra.mxu0 %v839
          %910 = vmatprep.subr.mxu0 0.0
          %911 = vmatpush1.xpose.msra.mxu0 %v842
          %912 = vmatprep.subr.mxu0 0.0
          %913 = vmatpush1.xpose.msra.mxu0 %v845
          %914 = vmatprep.subr.mxu0 0.0
          %915 = vmatpush1.xpose.msra.mxu0 %v848
          %916 = vmatprep.subr.mxu0 0.0
          %917 = vmatpush1.xpose.msra.mxu0 %v851
          %918 = vmatprep.subr.mxu0 0.0
          %919 = vmatpush1.xpose.msra.mxu0 %v854
          %920 = vmatprep.mubr.f32.mxu0 0.0
          %921 = vmatmul.mubr.f32.gmra.mrb[0].mxu0 %v758
          %v922 = vpop.f32.mrb[0].mxu0
          %v923 = vadd.f32 %v754, %v922
          %v924 = vpop.f32.mrb[0].mxu0
          %v925 = vadd.f32 %v754, %v924
          %926 = vdwg.mxu0
          %vm927 = vcmp.lt.s32.totalorder %v577, 256
          %vm928 = vcmp.lt.s32.totalorder %v578, 256
          %v929 = vsel %vm927, %v923, 0.0
          %v930 = vsel %vm928, %v925, 0.0
          %v931 = vld [vmem:[#allocation3] sm:$0x1]
          %v934 = vrot.slane %v929, 1
          %v935 = vrot.slane %v930, 1
          %938 = vmatprep.subr.mxu0 0.0
          %939 = vmatpush1.msra.mxu0 %v675
          %940 = vmatprep.subr.mxu0 0.0
          %941 = vmatpush1.msra.mxu0 %v676
          %942 = vmatprep.subr.mxu0 0.0
          %943 = vmatpush1.msra.mxu0 %v677
          %944 = vmatprep.subr.mxu0 0.0
          %945 = vmatpush1.msra.mxu0 %v678
          %946 = vmatprep.subr.mxu0 0.0
          %947 = vmatpush1.msra.mxu0 %v679
          %948 = vmatprep.subr.mxu0 0.0
          %949 = vmatpush1.msra.mxu0 %v680
          %950 = vmatprep.subr.mxu0 0.0
          %951 = vmatpush1.msra.mxu0 %v681
          %952 = vmatprep.subr.mxu0 0.0
          %953 = vmatpush1.msra.mxu0 %v682
          %954 = vmatprep.subr.mxu0 0.0
          %955 = vmatpush1.msra.mxu0 %v683
          %956 = vmatprep.subr.mxu0 0.0
          %957 = vmatpush1.msra.mxu0 %v684
          %958 = vmatprep.subr.mxu0 0.0
          %959 = vmatpush1.msra.mxu0 %v685
          %960 = vmatprep.subr.mxu0 0.0
          %961 = vmatpush1.msra.mxu0 %v686
          %962 = vmatprep.subr.mxu0 0.0
          %963 = vmatpush1.msra.mxu0 %v687
          %964 = vmatprep.subr.mxu0 0.0
          %965 = vmatpush1.msra.mxu0 %v688
          %966 = vmatprep.subr.mxu0 0.0
          %967 = vmatpush1.msra.mxu0 %v689
          %968 = vmatprep.subr.mxu0 0.0
          %969 = vmatpush1.msra.mxu0 %v690
          %970 = vmatprep.subr.mxu0 0.0
          %971 = vmatpush1.msra.mxu0 %v691
          %972 = vmatprep.subr.mxu0 0.0
          %973 = vmatpush1.msra.mxu0 %v692
          %974 = vmatprep.subr.mxu0 0.0
          %975 = vmatpush1.msra.mxu0 %v693
          %976 = vmatprep.subr.mxu0 0.0
          %977 = vmatpush1.msra.mxu0 %v694
          %978 = vmatprep.subr.mxu0 0.0
          %979 = vmatpush1.msra.mxu0 %v695
          %980 = vmatprep.subr.mxu0 0.0
          %981 = vmatpush1.msra.mxu0 %v696
          %982 = vmatprep.subr.mxu0 0.0
          %983 = vmatpush1.msra.mxu0 %v697
          %984 = vmatprep.subr.mxu0 0.0
          %985 = vmatpush1.msra.mxu0 %v698
          %986 = vmatprep.subr.mxu0 0.0
          %987 = vmatpush1.msra.mxu0 %v699
          %988 = vmatprep.subr.mxu0 0.0
          %989 = vmatpush1.msra.mxu0 %v700
          %990 = vmatprep.subr.mxu0 0.0
          %991 = vmatpush1.msra.mxu0 %v701
          %992 = vmatprep.subr.mxu0 0.0
          %993 = vmatpush1.msra.mxu0 %v702
          %994 = vmatprep.subr.mxu0 0.0
          %995 = vmatpush1.msra.mxu0 %v703
          %996 = vmatprep.subr.mxu0 0.0
          %997 = vmatpush1.msra.mxu0 %v704
          %998 = vmatprep.subr.mxu0 0.0
          %999 = vmatpush1.msra.mxu0 %v705
          %1000 = vmatprep.subr.mxu0 0.0
          %1001 = vmatpush1.msra.mxu0 %v706
          %1002 = vmatprep.mubr.f32.mxu0 %v935
          %1003 = vmatmul.mubr.f32.gmra.mrb[0].mxu0 %v934
          %v1004 = vpop.f32.mrb[0].mxu0
          %v1005 = vadd.f32 0.0, %v1004
          %v1006 = vpop.f32.mrb[0].mxu0
          %1007 = vdwg.mxu0
          %v1008 = vadd.f32 %v931, %v1005
          %vm1009 = vcmask 253952
          %1010 = vst.msk [vmem:[#allocation3] sm:$0x1] %vm1009, %v1008
          %v1013 = vcombine.low %v923, %v925
          %v1015 = vunpack.c.l.s4 1966171168
          %v1016 = vunpack.c.0.s8 %v1015
          %v1017 = vlaneseq
          %v1018 = vshrl.u32 %v1017, 7
          %v1019 = vsub.s32 %v1016, %v1018
          %v1020 = vrot.slane %v1013, %v1019
          %v1022 = vunpack.c.l.s4 1966171168
          %v1023 = vunpack.c.0.s8 %v1022
          %v1024 = vlaneseq
          %v1025 = vshrl.u32 %v1024, 7
          %v1026 = vsub.s32 %v1023, %v1025
          %v1027 = vrot.slane %v1020, %v1026
          %s1029 = smul.u32 %s23, 2
          %s1030 = scalar_lea.vmem [#allocation2], %s1029
          %v1031 = vlaneseq
          %vm1032 = vcmp.ge.s32.totalorder %v1031, 0
          %vm1033 = vcmp.lt.s32.totalorder %v1031, 256
          %vm1034 = vmand %vm1032, %vm1033
          %1035 = vst.msk [vmem:[%s1030] sm:$0x3] %vm1034, %v1027
        $region40: #{dcmm_forward.1} parent=35 // pred_fallthru
          _
        %p1036 = scmp.eq.s32.totalorder %s22, 1
        // Predicated region
        $region45: #{dcmm_forward.1} parent=35 // pred_check
          %p1037 = pneg %p1036
        $region46: #{dcmm_forward.1} parent=35 // pred_check_branch
          %1039 = sbr.rel (%p1037) target = $region48
        $region47: #{dcmm_forward.1} parent=35 // pred_region
          %v1040 = vld [vmem:[#allocation3] sm:$0x1]
          %v1042 = vsel %vm314, %v1040, 0
          %v1045 = vsel %vm314, %v675, 0
          %v1048 = vsel %vm314, %v676, 0
          %v1051 = vsel %vm314, %v677, 0
          %v1054 = vsel %vm314, %v678, 0
          %v1057 = vsel %vm314, %v679, 0
          %v1060 = vsel %vm314, %v680, 0
          %v1063 = vsel %vm314, %v681, 0
          %v1066 = vsel %vm314, %v682, 0
          %v1069 = vsel %vm314, %v683, 0
          %v1072 = vsel %vm314, %v684, 0
          %v1075 = vsel %vm314, %v685, 0
          %v1078 = vsel %vm314, %v686, 0
          %v1081 = vsel %vm314, %v687, 0
          %v1084 = vsel %vm314, %v688, 0
          %v1087 = vsel %vm314, %v689, 0
          %v1090 = vsel %vm314, %v690, 0
          %v1093 = vsel %vm314, %v691, 0
          %v1096 = vsel %vm314, %v692, 0
          %v1099 = vsel %vm314, %v693, 0
          %v1102 = vsel %vm314, %v694, 0
          %v1105 = vsel %vm314, %v695, 0
          %v1108 = vsel %vm314, %v696, 0
          %v1111 = vsel %vm314, %v697, 0
          %v1114 = vsel %vm314, %v698, 0
          %v1117 = vsel %vm314, %v699, 0
          %v1120 = vsel %vm314, %v700, 0
          %v1123 = vsel %vm314, %v701, 0
          %v1126 = vsel %vm314, %v702, 0
          %v1129 = vsel %vm314, %v703, 0
          %v1132 = vsel %vm314, %v704, 0
          %v1135 = vsel %vm314, %v705, 0
          %v1138 = vsel %vm314, %v706, 0
          %1140 = vmatprep.subr.mxu0 0.0
          %1141 = vmatpush1.xpose.msra.mxu0 %v1045
          %1142 = vmatprep.subr.mxu0 0.0
          %1143 = vmatpush1.xpose.msra.mxu0 %v1048
          %1144 = vmatprep.subr.mxu0 0.0
          %1145 = vmatpush1.xpose.msra.mxu0 %v1051
          %1146 = vmatprep.subr.mxu0 0.0
          %1147 = vmatpush1.xpose.msra.mxu0 %v1054
          %1148 = vmatprep.subr.mxu0 0.0
          %1149 = vmatpush1.xpose.msra.mxu0 %v1057
          %1150 = vmatprep.subr.mxu0 0.0
          %1151 = vmatpush1.xpose.msra.mxu0 %v1060
          %1152 = vmatprep.subr.mxu0 0.0
          %1153 = vmatpush1.xpose.msra.mxu0 %v1063
          %1154 = vmatprep.subr.mxu0 0.0
          %1155 = vmatpush1.xpose.msra.mxu0 %v1066
          %1156 = vmatprep.subr.mxu0 0.0
          %1157 = vmatpush1.xpose.msra.mxu0 %v1069
          %1158 = vmatprep.subr.mxu0 0.0
          %1159 = vmatpush1.xpose.msra.mxu0 %v1072
          %1160 = vmatprep.subr.mxu0 0.0
          %1161 = vmatpush1.xpose.msra.mxu0 %v1075
          %1162 = vmatprep.subr.mxu0 0.0
          %1163 = vmatpush1.xpose.msra.mxu0 %v1078
          %1164 = vmatprep.subr.mxu0 0.0
          %1165 = vmatpush1.xpose.msra.mxu0 %v1081
          %1166 = vmatprep.subr.mxu0 0.0
          %1167 = vmatpush1.xpose.msra.mxu0 %v1084
          %1168 = vmatprep.subr.mxu0 0.0
          %1169 = vmatpush1.xpose.msra.mxu0 %v1087
          %1170 = vmatprep.subr.mxu0 0.0
          %1171 = vmatpush1.xpose.msra.mxu0 %v1090
          %1172 = vmatprep.subr.mxu0 0.0
          %1173 = vmatpush1.xpose.msra.mxu0 %v1093
          %1174 = vmatprep.subr.mxu0 0.0
          %1175 = vmatpush1.xpose.msra.mxu0 %v1096
          %1176 = vmatprep.subr.mxu0 0.0
          %1177 = vmatpush1.xpose.msra.mxu0 %v1099
          %1178 = vmatprep.subr.mxu0 0.0
          %1179 = vmatpush1.xpose.msra.mxu0 %v1102
          %1180 = vmatprep.subr.mxu0 0.0
          %1181 = vmatpush1.xpose.msra.mxu0 %v1105
          %1182 = vmatprep.subr.mxu0 0.0
          %1183 = vmatpush1.xpose.msra.mxu0 %v1108
          %1184 = vmatprep.subr.mxu0 0.0
          %1185 = vmatpush1.xpose.msra.mxu0 %v1111
          %1186 = vmatprep.subr.mxu0 0.0
          %1187 = vmatpush1.xpose.msra.mxu0 %v1114
          %1188 = vmatprep.subr.mxu0 0.0
          %1189 = vmatpush1.xpose.msra.mxu0 %v1117
          %1190 = vmatprep.subr.mxu0 0.0
          %1191 = vmatpush1.xpose.msra.mxu0 %v1120
          %1192 = vmatprep.subr.mxu0 0.0
          %1193 = vmatpush1.xpose.msra.mxu0 %v1123
          %1194 = vmatprep.subr.mxu0 0.0
          %1195 = vmatpush1.xpose.msra.mxu0 %v1126
          %1196 = vmatprep.subr.mxu0 0.0
          %1197 = vmatpush1.xpose.msra.mxu0 %v1129
          %1198 = vmatprep.subr.mxu0 0.0
          %1199 = vmatpush1.xpose.msra.mxu0 %v1132
          %1200 = vmatprep.subr.mxu0 0.0
          %1201 = vmatpush1.xpose.msra.mxu0 %v1135
          %1202 = vmatprep.subr.mxu0 0.0
          %1203 = vmatpush1.xpose.msra.mxu0 %v1138
          %1204 = vmatprep.mubr.f32.mxu0 0.0
          %1205 = vmatmul.mubr.f32.gmra.mrb[0].mxu0 %v1042
          %v1206 = vpop.f32.mrb[0].mxu0
          %v1207 = vadd.f32 0.0, %v1206
          %v1208 = vpop.f32.mrb[0].mxu0
          %v1209 = vadd.f32 0.0, %v1208
          %1210 = vdwg.mxu0
          %s1211 = smul.u32 %s23, 2
          %s1212 = scalar_lea.vmem [#allocation2], %s1211
          %v1213 = vld [vmem:[%s1212] sm:$0x3]
          %v1216 = vcombine.low %v1207, %v1209
          %v1218 = vunpack.c.l.s4 1966171168
          %v1219 = vunpack.c.0.s8 %v1218
          %v1220 = vlaneseq
          %v1221 = vshrl.u32 %v1220, 7
          %v1222 = vsub.s32 %v1219, %v1221
          %v1223 = vrot.slane %v1216, %v1222
          %v1225 = vunpack.c.l.s4 1966171168
          %v1226 = vunpack.c.0.s8 %v1225
          %v1227 = vlaneseq
          %v1228 = vshrl.u32 %v1227, 7
          %v1229 = vsub.s32 %v1226, %v1228
          %v1230 = vrot.slane %v1223, %v1229
          %v1232 = vadd.f32 %v1213, %v1230
          %v1233 = vlaneseq
          %vm1234 = vcmp.ge.s32.totalorder %v1233, 0
          %vm1235 = vcmp.lt.s32.totalorder %v1233, 256
          %vm1236 = vmand %vm1234, %vm1235
          %1237 = vst.msk [vmem:[%s231] sm:$0x3] %vm1236, %v1232
        $region48: #{dcmm_forward.1} parent=35 // pred_fallthru
          _
        %s1238 = sand.u32 %s138, 1
        %s1239 = scalar_lea.sflag [#allocation5], %s1238
        %s1240 = sand.u32 %s138, 1
        %s1241 = smul.addr %s1240, 2
        %s1242 = scalar_lea.vmem [#allocation4], %s1241
        // Predicated region
        $region49: #{dcmm_forward.1} parent=35 // pred_check
          %p1243 = pneg %p148
        $region50: #{dcmm_forward.1} parent=35 // pred_check_branch
          %1245 = sbr.rel (%p1243) target = $region52
        $region51: #{dcmm_forward.1} parent=35 // pred_region
          %s1246 = smul.u32 %s23, %s22
          %s1247 = smul.u32 2, %s1246
          %s1249 = ssub.s32 32, 32
          %1250 = vsyncadd %s1239, %s1249
          %s1251 = smul.addr %s1247, 16
          %s1252 = scalar_lea.hbm %s4, %s1251
          %s1254 = sshll.u32 %s1242, 4
          %s1255 = int_to_ptr.vmem [resolvable:$true] %s1254
          %1257 = dma.vmem_to_hbm [thread:$0]  %s1255, 32, %s1252, %s1239
        $region52: #{dcmm_forward.1} parent=35 // pred_fallthru
          _
      $region36: #{dcmm_forward.1} parent=5 // pred_fallthru
        _
      %p1258 = scmp.le.s32.totalorder 2, %s13
      // Predicated region
      $region53: #{dcmm_forward.1} parent=5 // pred_check
        %p1259 = pneg %p1258
      $region54: #{dcmm_forward.1} parent=5 // pred_check_branch
        %1261 = sbr.rel (%p1259) target = $region56
      $region55: #{dcmm_forward.1} parent=5 // pred_region
        %s1262 = ssub.s32 %s13, 2
        // Predicated region
        $region57: #{dcmm_forward.1} parent=55 // pred_check
          %p1263 = pneg %p154
        $region58: #{dcmm_forward.1} parent=55 // pred_check_branch
          %1265 = sbr.rel (%p1263) target = $region60
        $region59: #{dcmm_forward.1} parent=55 // pred_region
          %s1266 = sand.u32 %s139, 1
          %s1267 = scalar_lea.sflag [#allocation5], %s1266
          %s1268 = sand.u32 %s139, 1
          %s1269 = smul.addr %s1268, 2
          %s1270 = scalar_lea.vmem [#allocation4], %s1269
          %1271 = dma.done %s1267, 32
        $region60: #{dcmm_forward.1} parent=55 // pred_fallthru
          _
      $region56: #{dcmm_forward.1} parent=5 // pred_fallthru
        _
    $region6: #{dcmm_forward.1} parent=1 // loop_footer
      %s17 = sadd.s32 1, %s13
    $region7: #{dcmm_forward.1} parent=1 // loop_footer_branch
      %12 = sbr.rel target = $region3
    $region8: #{dcmm_forward.1} parent=1 // loop_exit
      _
    %1272 = vsyncpa [#allocation5], 1
    %s1273 = scalar_lea.sflag [#allocation5], 1
    %1274 = vsyncpa %s1273, 1

</llo_original>
